<compile_context>
chip_gen: v5e
topology: v5e:2x2
jax: 0.10.0
libtpu: 0.0.40
codegen_flags: <defaults>
</compile_context>

<pallas_src>
import jax
import jax.numpy as jnp
from jax import lax
from jax.experimental import pallas as pl
from jax.experimental.pallas import tpu as pltpu

_EPS = 1e-12  # F.normalize eps default


def _round_up(x: int, m: int) -> int:
    return (x + m - 1) // m * m


def _cdiv(a: int, b: int) -> int:
    return -(-a // b)


def _balanced_tile(total: int, target: int, align: int) -> int:
    """Tile size <= target, multiple of `align`, evenly covering `total`."""
    n = max(1, _cdiv(total, target))
    return _round_up(_cdiv(total, n), align)


def _cosine_matmul_kernel(x_ref, w_ref, o_ref, acc_ref):
    # x_ref: (tm, tk) bf16 pre-normalized input tile.
    # w_ref: (tk, tn) bf16 pre-normalized, pre-transposed weight tile.
    # o_ref: (tm, tn) output tile.   acc_ref: (tm, tn) f32 accumulator.
    k = pl.program_id(2)

    @pl.when(k == 0)
    def _init():
        acc_ref[...] = jnp.zeros_like(acc_ref)

    acc_ref[...] += jnp.dot(
        x_ref[...], w_ref[...], preferred_element_type=jnp.float32
    )

    @pl.when(k == pl.num_programs(2) - 1)
    def _store():
        o_ref[...] = acc_ref[...].astype(o_ref.dtype)


def cosine_forward(
    x: jax.Array,
    w: jax.Array,
    *,
    tm_target: int = 256,
    tn_target: int = 512,
    tk_target: int = 2048,
    out_dtype=None,
) -> jax.Array:
    """x: (B, in_dim), w: (out_dim, in_dim) -> (B, out_dim) cosine sims."""
    B, in_dim = x.shape
    out_dim, in_dim_w = w.shape
    assert in_dim == in_dim_w
    out_dtype = x.dtype if out_dtype is None else out_dtype
    out_itemsize = jnp.dtype(out_dtype).itemsize

    # ---------------- tile sizing ----------------
    b8 = _round_up(B, 8)
    n128 = _round_up(out_dim, 128)
    k128 = _round_up(in_dim, 128)

    tm = _balanced_tile(b8, tm_target, 8)
    tn = _balanced_tile(n128, tn_target, 128)
    tk = _balanced_tile(k128, tk_target, 128)

    # Give both v7x TensorCores work when the output grid would be 1x1.
    if _cdiv(b8, tm) == 1 and _cdiv(n128, tn) == 1:
        if n128 >= 256:
            tn = _round_up(_cdiv(n128, 2), 128)
        elif b8 >= 16:
            tm = _round_up(_cdiv(b8, 2), 8)

    # Keep the per-step VMEM footprint under ~40 MiB (v7x has 64 MiB physical).
    def _vmem_est(tm_, tn_, tk_):
        return (
            2 * (tm_ * tk_ + tk_ * tn_) * 2     # double-buffered bf16 inputs
            + 2 * tm_ * tn_ * out_itemsize      # double-buffered output tile
            + tm_ * tn_ * 4                     # f32 accumulator scratch
        )

    budget = 40 * 1024 * 1024
    while _vmem_est(tm, tn, tk) > budget:
        if tk > 128:
            tk = _round_up(tk // 2, 128)
        elif tn > 128:
            tn = _round_up(tn // 2, 128)
        elif tm > 8:
            tm = _round_up(tm // 2, 8)
        else:
            break

    Bp = _round_up(B, tm)
    Np = _round_up(out_dim, tn)
    Kp = _round_up(in_dim, tk)
    n_i, n_j, n_k = Bp // tm, Np // tn, Kp // tk

    # ------------- hoisted normalization (single fused pass each) -------------
    # Pad BEFORE normalizing so XLA fuses pad + normalize; zero rows normalize
    # to zero (eps guard) and zero K-columns contribute nothing.
    x32 = x.astype(jnp.float32)
    if (Bp, Kp) != (B, in_dim):
        x32 = jnp.pad(x32, ((0, Bp - B), (0, Kp - in_dim)))
    x_inv = lax.rsqrt(
        jnp.maximum(jnp.sum(x32 * x32, axis=-1, keepdims=True), _EPS * _EPS)
    )
    unit_x = (x32 * x_inv).astype(jnp.bfloat16)                 # (Bp, Kp)

    w32 = w.astype(jnp.float32)
    if (Np, Kp) != (out_dim, in_dim):
        w32 = jnp.pad(w32, ((0, Np - out_dim), (0, Kp - in_dim)))
    w_inv = lax.rsqrt(
        jnp.maximum(jnp.sum(w32 * w32, axis=-1, keepdims=True), _EPS * _EPS)
    )
    unit_wT = jnp.transpose((w32 * w_inv).astype(jnp.bfloat16))  # (Kp, Np)

    # ------------- shape-dependent grid ordering (held vs streamed) -----------
    x_bytes = Bp * Kp * 2
    w_bytes = Kp * Np * 2
    cost_hold_w = x_bytes * n_j + w_bytes * (1 if n_k == 1 else n_i)
    cost_hold_x = x_bytes * (1 if n_k == 1 else n_j) + w_bytes * n_i
    hold_w = cost_hold_w <= cost_hold_x

    if hold_w:
        grid = (n_j, n_i, n_k)
        x_map = lambda j, i, k: (i, k)
        w_map = lambda j, i, k: (k, j)
        o_map = lambda j, i, k: (i, j)
    else:
        grid = (n_i, n_j, n_k)
        x_map = lambda i, j, k: (i, k)
        w_map = lambda i, j, k: (k, j)
        o_map = lambda i, j, k: (i, j)

    cost = pl.CostEstimate(
        flops=2 * Bp * Np * Kp,
        transcendentals=0,
        bytes_accessed=min(cost_hold_w, cost_hold_x) + Bp * Np * out_itemsize,
    )
    vmem_limit = int(min(48 * 1024 * 1024,
                         max(24 * 1024 * 1024, 3 * _vmem_est(tm, tn, tk))))

    out_p = pl.pallas_call(
        _cosine_matmul_kernel,
        out_shape=jax.ShapeDtypeStruct((Bp, Np), out_dtype),
        grid_spec=pltpu.PrefetchScalarGridSpec(
            num_scalar_prefetch=0,
            grid=grid,
            in_specs=[
                pl.BlockSpec((tm, tk), x_map),
                pl.BlockSpec((tk, tn), w_map),
            ],
            out_specs=pl.BlockSpec((tm, tn), o_map),
            scratch_shapes=[pltpu.VMEM((tm, tn), jnp.float32)],
        ),
        compiler_params=pltpu.CompilerParams(
            dimension_semantics=("parallel", "parallel", "arbitrary"),
            vmem_limit_bytes=vmem_limit,
        ),
        cost_estimate=cost,
    )(unit_x, unit_wT)

    if (Bp, Np) != (B, out_dim):
        out_p = out_p[:B, :out_dim]
    return out_p


def _reference(x, w):
    x = x.astype(jnp.float32)
    w = w.astype(jnp.float32)
    unit_x = x / jnp.maximum(jnp.linalg.norm(x, axis=-1, keepdims=True), _EPS)
    unit_w = w / jnp.maximum(jnp.linalg.norm(w, axis=-1, keepdims=True), _EPS)
    return unit_x @ unit_w.T


if __name__ == "__main__":
    key = jax.random.PRNGKey(0)
    k_x, k_w = jax.random.split(key)

    B, in_dim, out_dim = 8, 32, 16
    x = jax.random.normal(k_x, (B, in_dim), dtype=jnp.float32)
    # nn.Linear(in_dim, out_dim, bias=False).weight has shape (out_dim, in_dim);
    # weight_norm's g is fixed to 1 so only the row direction matters.
    w = jax.random.normal(k_w, (out_dim, in_dim), dtype=jnp.float32) * 0.1

    out = jax.jit(cosine_forward)(x, w)
    jax.block_until_ready(out)

    ref = _reference(x, w)
    assert out.shape == (B, out_dim)
    # bf16 MXU operands -> ~0.4% relative error budget on values in [-1, 1].
    assert jnp.allclose(out, ref, atol=2e-2, rtol=2e-2), float(
        jnp.max(jnp.abs(out - ref))
    )
    # Cosine similarities are bounded (up to bf16 rounding of the unit vectors).
    assert jnp.all(jnp.abs(out) <= 1.0 + 2e-2)

    print("KERNEL_OK")
</pallas_src>

<mosaic_0001>
module attributes {stable_mosaic.version = 11 : i64} {
  func.func @_cosine_matmul_kernel(%arg0: i32, %arg1: i32, %arg2: i32, %arg3: memref<8x128xbf16, #tpu.memory_space<vmem>>, %arg4: memref<128x128xbf16, #tpu.memory_space<vmem>>, %arg5: memref<8x128xf32, #tpu.memory_space<vmem>>, %arg6: memref<8x128xf32, #tpu.memory_space<vmem>>) attributes {dimension_semantics = [#tpu.dimension_semantics<parallel>, #tpu.dimension_semantics<parallel>, #tpu.dimension_semantics<arbitrary>], iteration_bounds = array<i64: 1, 1, 1>, scalar_prefetch = 0 : i64, scratch_operands = 1 : i64, tpu.core_type = #tpu.core_type<tc>, window_params = [{transform_indices = @transform_0, window_bounds = array<i64: 8, 128>}, {transform_indices = @transform_1, window_bounds = array<i64: 128, 128>}, {transform_indices = @transform_2, window_bounds = array<i64: 8, 128>}]} {
    %c0_i32 = arith.constant 0 : i32
    %0 = arith.cmpi eq, %arg2, %c0_i32 : i32
    %1 = arith.extui %0 : i1 to i32
    %c0_i32_0 = arith.constant 0 : i32
    %2 = arith.cmpi ne, %1, %c0_i32_0 : i32
    scf.if %2 {
      %cst_10 = arith.constant 0.000000e+00 : f32
      %12 = vector.broadcast %cst_10 : f32 to vector<8x128xf32>
      %c0_11 = arith.constant 0 : index
      %c0_12 = arith.constant 0 : index
      %13 = vector.load %arg6[%c0_11, %c0_12] : memref<8x128xf32, #tpu.memory_space<vmem>>, vector<8x128xf32>
      tpu.vector_store %arg6[%c0_11, %c0_12], %12 {strides = array<i32>} : memref<8x128xf32, #tpu.memory_space<vmem>>, vector<8x128xf32>,
    } else {
    }
    %c0 = arith.constant 0 : index
    %c0_1 = arith.constant 0 : index
    %3 = vector.load %arg6[%c0, %c0_1] : memref<8x128xf32, #tpu.memory_space<vmem>>, vector<8x128xf32>
    %c0_2 = arith.constant 0 : index
    %c0_3 = arith.constant 0 : index
    %4 = vector.load %arg3[%c0_2, %c0_3] : memref<8x128xbf16, #tpu.memory_space<vmem>>, vector<8x128xbf16>
    %c0_4 = arith.constant 0 : index
    %c0_5 = arith.constant 0 : index
    %5 = vector.load %arg4[%c0_4, %c0_5] : memref<128x128xbf16, #tpu.memory_space<vmem>>, vector<128x128xbf16>
    %cst = arith.constant dense<0.000000e+00> : vector<8x128xf32>
    %6 = tpu.matmul %4, %5, %cst {dimension_numbers = #tpu.dot_dimension_numbers<[1], [0], [0], [1], [0, 0, 1, 1], [], []>} : vector<8x128xbf16>, vector<128x128xbf16>, vector<8x128xf32> -> vector<8x128xf32>
    %7 = arith.addf %3, %6 : vector<8x128xf32>
    %c0_6 = arith.constant 0 : index
    %c0_7 = arith.constant 0 : index
    %8 = vector.load %arg6[%c0_6, %c0_7] : memref<8x128xf32, #tpu.memory_space<vmem>>, vector<8x128xf32>
    tpu.vector_store %arg6[%c0_6, %c0_7], %7 {strides = array<i32>} : memref<8x128xf32, #tpu.memory_space<vmem>>, vector<8x128xf32>,
    %c0_i32_8 = arith.constant 0 : i32
    %9 = arith.cmpi eq, %arg2, %c0_i32_8 : i32
    %10 = arith.extui %9 : i1 to i32
    %c0_i32_9 = arith.constant 0 : i32
    %11 = arith.cmpi ne, %10, %c0_i32_9 : i32
    scf.if %11 {
      %c0_10 = arith.constant 0 : index
      %c0_11 = arith.constant 0 : index
      %12 = vector.load %arg6[%c0_10, %c0_11] : memref<8x128xf32, #tpu.memory_space<vmem>>, vector<8x128xf32>
      %c0_12 = arith.constant 0 : index
      %c0_13 = arith.constant 0 : index
      %13 = vector.load %arg5[%c0_12, %c0_13] : memref<8x128xf32, #tpu.memory_space<vmem>>, vector<8x128xf32>
      tpu.vector_store %arg5[%c0_12, %c0_13], %12 {strides = array<i32>} : memref<8x128xf32, #tpu.memory_space<vmem>>, vector<8x128xf32>,
    } else {
    }
    return
  }
  func.func @transform_0(%arg0: i32, %arg1: i32, %arg2: i32) -> (i32, i32) {
    %c0_i32 = arith.constant 0 : i32
    return %arg1, %arg2 : i32, i32
  }
  func.func @transform_1(%arg0: i32, %arg1: i32, %arg2: i32) -> (i32, i32) {
    %c0_i32 = arith.constant 0 : i32
    return %arg2, %arg0 : i32, i32
  }
  func.func @transform_2(%arg0: i32, %arg1: i32, %arg2: i32) -> (i32, i32) {
    %c0_i32 = arith.constant 0 : i32
    return %arg1, %arg0 : i32, i32
  }
}

</mosaic_0001>

<llo_original>
// kernel: cosine_forward.1
$region0: #{cosine_forward.1}
  #allocation0 [shape = 'u32[]', space=smem, size = 0x4, offset = 0x4, fixed_abs, tag = 'smem constant byte address 0x4 - core index']
  #allocation1 [shape = 'u32[72,128]{1,0:T(1,128)}', space=vmem, size = 0x9000, scoped, tag = 'internal scratch']
  #allocation2 [shape = 'f32[8,128]{1,0:T(8,128)}', space=vmem, size = 0x1000, scoped, tag = 'scratch operand']
  %s0 = inlined_call_operand.vmem [shape: bf16[8,128], index: 0, kind: input, shape index: {}]
  %s1 = inlined_call_operand.vmem [shape: bf16[128,128], index: 1, kind: input, shape index: {}]
  %s2 = inlined_call_operand.hbm [shape: f32[8,128], index: 2, kind: output, shape index: {}]
  %s3 = sld [smem:[#allocation0]]
  $region26: #{cosine_forward.1} parent=0
    _
  %s5 = ssub.s32 1, %s3
  %s6 = scalar_select 0, %s5, %s3
  $region1: #{cosine_forward.1} parent=0
    #allocation3 [shape = 'u8[4096]{0}', space=vmem, size = 0x1000, scoped, tag = 'output window, operand 0, single buffered']
    #allocation4 [shape = 's32[1]{0}', space=sflag, size = 0x4, scoped, tag = 'scoped memory for cosine_forward.1']
    %7 = vsyncpa [#allocation4], 0
    // Predicated region
    $region2: #{cosine_forward.1} parent=1 // pred_check
      _
    $region3: #{cosine_forward.1} parent=1 // pred_check_branch
      %9 = sbr.rel (0) target = $region5
    $region4: #{cosine_forward.1} parent=1 // pred_region
      _
    $region5: #{cosine_forward.1} parent=1 // pred_fallthru
      _
    // Predicated region
    $region6: #{cosine_forward.1} parent=1 // pred_check
      _
    $region7: #{cosine_forward.1} parent=1 // pred_check_branch
      %11 = sbr.rel (0) target = $region9
    $region8: #{cosine_forward.1} parent=1 // pred_region
      _
    $region9: #{cosine_forward.1} parent=1 // pred_fallthru
      _
    %p12 = scmp.eq.s32.totalorder 0, 0
    // Predicated region
    $region10: #{cosine_forward.1} parent=1 // pred_check
      %p13 = pneg %p12
    $region11: #{cosine_forward.1} parent=1 // pred_check_branch
      %15 = sbr.rel (%p13) target = $region13
    $region12: #{cosine_forward.1} parent=1 // pred_region
      %16 = vst [vmem:[#allocation2] sm:$0xff] 0.0
    $region13: #{cosine_forward.1} parent=1 // pred_fallthru
      _
    %v17 = vld [vmem:[#allocation2] sm:$0xff]
    %v18 = vld [vmem:[%s0] sm:$0xf]
    %v19 = vld [vmem:[%s1] sm:$0xf]
    %v20 = vld [vmem:[%s1 + $0x4] sm:$0xf]
    %v21 = vld [vmem:[%s1 + $0x8] sm:$0xf]
    %v22 = vld [vmem:[%s1 + $0xc] sm:$0xf]
    %v23 = vld [vmem:[%s1 + $0x10] sm:$0xf]
    %v24 = vld [vmem:[%s1 + $0x14] sm:$0xf]
    %v25 = vld [vmem:[%s1 + $0x18] sm:$0xf]
    %v26 = vld [vmem:[%s1 + $0x1c] sm:$0xf]
    %v27 = vld [vmem:[%s1 + $0x20] sm:$0xf]
    %v28 = vld [vmem:[%s1 + $0x24] sm:$0xf]
    %v29 = vld [vmem:[%s1 + $0x28] sm:$0xf]
    %v30 = vld [vmem:[%s1 + $0x2c] sm:$0xf]
    %v31 = vld [vmem:[%s1 + $0x30] sm:$0xf]
    %v32 = vld [vmem:[%s1 + $0x34] sm:$0xf]
    %v33 = vld [vmem:[%s1 + $0x38] sm:$0xf]
    %v34 = vld [vmem:[%s1 + $0x3c] sm:$0xf]
    %v51 = vunpack.c.l.b16 %v19
    %v52 = vunpack.c.l.b16 %v20
    %v53 = vunpack.c.l.b16 %v21
    %v54 = vunpack.c.l.b16 %v22
    %v55 = vunpack.c.l.b16 %v23
    %v56 = vunpack.c.l.b16 %v24
    %v57 = vunpack.c.l.b16 %v25
    %v58 = vunpack.c.l.b16 %v26
    %v59 = vunpack.c.l.b16 %v27
    %v60 = vunpack.c.l.b16 %v28
    %v61 = vunpack.c.l.b16 %v29
    %v62 = vunpack.c.l.b16 %v30
    %v63 = vunpack.c.l.b16 %v31
    %v64 = vunpack.c.l.b16 %v32
    %v65 = vunpack.c.l.b16 %v33
    %v66 = vunpack.c.l.b16 %v34
    %v67 = vpack.c.b16 %v52, %v51
    %v68 = vpack.c.b16 %v54, %v53
    %v69 = vpack.c.b16 %v56, %v55
    %v70 = vpack.c.b16 %v58, %v57
    %v71 = vpack.c.b16 %v60, %v59
    %v72 = vpack.c.b16 %v62, %v61
    %v73 = vpack.c.b16 %v64, %v63
    %v74 = vpack.c.b16 %v66, %v65
    %83 = vmatpush.bf16.msra.mxu0 %v74
    %84 = vmatpush.bf16.msra.mxu0 %v73
    %85 = vmatpush.bf16.msra.mxu0 %v72
    %86 = vmatpush.bf16.msra.mxu0 %v71
    %87 = vmatpush.bf16.msra.mxu0 %v70
    %88 = vmatpush.bf16.msra.mxu0 %v69
    %89 = vmatpush.bf16.msra.mxu0 %v68
    %90 = vmatpush.bf16.msra.mxu0 %v67
    %91 = vmatmul.bf16.gmra.mxu0 %v18
    %v92 = vpop.f32.mrf.mxu0
    %v93 = vadd.f32 0.0, %v92
    %v94 = vpop.f32.mrf.mxu0
    %95 = vdwg.mxu0
    %v96 = vadd.f32 %v17, %v93
    %97 = vst [vmem:[#allocation2] sm:$0xff] %v96
    // Predicated region
    $region14: #{cosine_forward.1} parent=1 // pred_check
      %p98 = pneg %p12
    $region15: #{cosine_forward.1} parent=1 // pred_check_branch
      %100 = sbr.rel (%p98) target = $region17
    $region16: #{cosine_forward.1} parent=1 // pred_region
      %v101 = vld [vmem:[#allocation2] sm:$0xff]
      %102 = vst [vmem:[#allocation3] sm:$0xff] %v101
    $region17: #{cosine_forward.1} parent=1 // pred_fallthru
      _
    // Predicated region
    $region18: #{cosine_forward.1} parent=1 // pred_check
      _
    $region19: #{cosine_forward.1} parent=1 // pred_check_branch
      %104 = sbr.rel (0) target = $region21
    $region20: #{cosine_forward.1} parent=1 // pred_region
      %106 = vsyncadd [#allocation4], 0
      %s108 = sshll.u32 [#allocation3], 4
      %s109 = int_to_ptr.vmem [resolvable:$true] %s108
      %s110 = sshll.u32 %s2, 4
      %s111 = int_to_ptr.hbm [resolvable:$true] %s110
      %113 = dma.vmem_to_hbm [thread:$0]  %s109, 128, %s111, [#allocation4]
    $region21: #{cosine_forward.1} parent=1 // pred_fallthru
      _
    // Predicated region
    $region22: #{cosine_forward.1} parent=1 // pred_check
      _
    $region23: #{cosine_forward.1} parent=1 // pred_check_branch
      %115 = sbr.rel (0) target = $region25
    $region24: #{cosine_forward.1} parent=1 // pred_region
      %117 = dma.done [#allocation4], 128
    $region25: #{cosine_forward.1} parent=1 // pred_fallthru
      _
    %118 = vsyncpa [#allocation4], 1

</llo_original>
